<compile_context>
chip_gen: v7x
topology: tpu7x:2x2x1
jax: 0.10.0
libtpu: 0.0.40
codegen_flags: <defaults>
</compile_context>

<pallas_src>
import jax
import jax.numpy as jnp
from jax.experimental import pallas as pl
from jax.experimental.pallas import tpu as pltpu

_LANE = 128


def _round_up(x, m):
    return -(-x // m) * m


def _sse_kernel(x_ref, w_ref, b_ref, o_ref):
    # x_ref: (Bt, C, HWt)  input block (NCHW, spatial flattened into lanes)
    # w_ref: (1, C, 1)     1x1-conv weight as a per-channel column (f32)
    # b_ref: (1, 1, 1)     conv bias (f32)
    # o_ref: (Bt, C, HWt)  gated output block
    # 1x1 conv (C -> 1): channel (sublane) reduction in f32.
    s = jnp.sum(x_ref[...].astype(jnp.float32) * w_ref[...], axis=1, keepdims=True)
    s = s + b_ref[...]                                     # (Bt, 1, HWt)
    gate = pl.reciprocal(1.0 + jnp.exp(-s), approx=False)  # exact sigmoid in f32
    # Re-index x_ref (no persistent f32 copy of the block); gate multiply in the I/O dtype
    # (bf16 VALU on v6e/v7x for bf16 inputs, f32 for f32 inputs).
    o_ref[...] = x_ref[...] * gate.astype(o_ref.dtype)


def _vmem_limit_bytes():
    """Scoped-VMEM limit derived from the chip's physical VMEM (with headroom)."""
    try:
        cap = int(pltpu.get_tpu_info().vmem_capacity_bytes)
    except Exception:
        cap = 64 * 1024 * 1024  # conservative: v7x physical VMEM per TensorCore
    limit = min((cap * 3) // 4, 96 * 1024 * 1024)   # 48 MiB on v7x, 96 MiB on v5e/v6e
    return max(limit, 32 * 1024 * 1024)


def sse_block_pallas(x_nchw, weight, bias):
    """sSE forward.  x: (N, C, H, W); weight: (1, C, 1, 1) (PyTorch Conv2d layout); bias: (1,)."""
    N, C, H, W = x_nchw.shape
    Co, Cw, KH, KW = weight.shape
    assert Co == 1 and Cw == C and KH == 1 and KW == 1
    HW = H * W
    itemsize = jnp.dtype(x_nchw.dtype).itemsize

    x = x_nchw.reshape(N, C, HW)                      # free reshape, stays NCHW-contiguous
    w = weight.reshape(1, C, 1).astype(jnp.float32)
    b = bias.reshape(1, 1, 1).astype(jnp.float32)

    # ---- VMEM-aware tile selection ------------------------------------------------------
    vmem_limit = _vmem_limit_bytes()
    # Footprint per grid step ~ 2x in-block + 2x out-block + f32 temporaries  =>  budget one
    # block at ~1/8 of the scoped limit (6 MiB on v7x, 8 MiB cap on v5e/v6e).
    block_budget = min(vmem_limit // 8, 8 * 1024 * 1024)

    sublane = 8 * (4 // itemsize)                     # 8 (f32), 16 (bf16), 32 (int8)
    c_pad = _round_up(C, sublane)                     # sublane padding of C in VMEM tiles

    if HW <= _LANE:
        hwt = HW                                      # full spatial dim (always legal)
    else:
        # Lane-dense tile in the 512-2048 sweet spot, capped by the VMEM budget; the ragged
        # last block (when hwt doesn't divide HW) is handled by cdiv + masked writeback.
        hwt_budget = max(_LANE, ((block_budget // (c_pad * itemsize)) // _LANE) * _LANE)
        hwt = max(_LANE, min((HW // _LANE) * _LANE, 2048, hwt_budget))
    ns = -(-HW // hwt)

    bt = max(1, min(N, block_budget // max(1, c_pad * hwt * itemsize)))
    nb = -(-N // bt)

    # Guarantee >= 2 grid steps: keeps both v7x TensorCores busy and lets the pipeline
    # overlap DMA with compute even when the whole problem fits one block.
    if nb * ns < 2:
        if N >= 2:
            bt = -(-N // 2)
            nb = -(-N // bt)
        elif HW > _LANE:
            hwt = max(_LANE, (-(-(HW // _LANE) // 2)) * _LANE)
            ns = -(-HW // hwt)

    grid = (nb, ns)

    out = pl.pallas_call(
        _sse_kernel,
        out_shape=jax.ShapeDtypeStruct((N, C, HW), x_nchw.dtype),
        grid_spec=pltpu.PrefetchScalarGridSpec(
            num_scalar_prefetch=0,
            grid=grid,
            in_specs=[
                pl.BlockSpec((bt, C, hwt), lambda bi, si: (bi, 0, si)),
                pl.BlockSpec((1, C, 1), lambda bi, si: (0, 0, 0)),
                pl.BlockSpec((1, 1, 1), lambda bi, si: (0, 0, 0)),
            ],
            out_specs=pl.BlockSpec((bt, C, hwt), lambda bi, si: (bi, 0, si)),
        ),
        compiler_params=pltpu.CompilerParams(
            dimension_semantics=("parallel", "parallel"),
            vmem_limit_bytes=vmem_limit),
    )(x, w, b)
    return out.reshape(N, C, H, W)


def sse_block_reference(x_nchw, weight, bias):
    """Pure-JAX reference of the PyTorch forward pass (for validation)."""
    s = jnp.einsum('nchw,c->nhw', x_nchw, weight[0, :, 0, 0]) + bias[0]
    s = jax.nn.sigmoid(s)
    return x_nchw * s[:, None, :, :]


if __name__ == "__main__":
    N, C, H, W = 2, 4, 16, 16

    key = jax.random.PRNGKey(0)
    kx, kw, kb = jax.random.split(key, 3)
    x = jax.random.normal(kx, (N, C, H, W), dtype=jnp.float32)
    weight = 0.5 * jax.random.normal(kw, (1, C, 1, 1), dtype=jnp.float32)  # Conv2d(C,1,k=1) weight
    bias = 0.1 * jax.random.normal(kb, (1,), dtype=jnp.float32)            # Conv2d bias

    out = jax.block_until_ready(sse_block_pallas(x, weight, bias))
    ref = jax.block_until_ready(sse_block_reference(x, weight, bias))

    assert out.shape == (N, C, H, W), out.shape
    assert jnp.allclose(out, ref, atol=1e-5, rtol=1e-5), float(jnp.max(jnp.abs(out - ref)))

    print("KERNEL_OK")
</pallas_src>

<mosaic_0001>
module attributes {stable_mosaic.version = 11 : i64} {
  func.func @_sse_kernel(%arg0: i32, %arg1: i32, %arg2: memref<1x4x256xf32, #tpu.memory_space<vmem>>, %arg3: memref<1x4x1xf32, #tpu.memory_space<vmem>>, %arg4: memref<1x1x1xf32, #tpu.memory_space<vmem>>, %arg5: memref<1x4x256xf32, #tpu.memory_space<vmem>>) attributes {dimension_semantics = [#tpu.dimension_semantics<parallel>, #tpu.dimension_semantics<parallel>], iteration_bounds = array<i64: 2, 1>, scalar_prefetch = 0 : i64, scratch_operands = 0 : i64, tpu.core_type = #tpu.core_type<tc>, window_params = [{transform_indices = @transform_0, window_bounds = array<i64: 1, 4, 256>}, {pipeline_mode = #tpu.pipeline_mode<synchronous>, transform_indices = @transform_1, window_bounds = array<i64: 1, 4, 1>}, {pipeline_mode = #tpu.pipeline_mode<synchronous>, transform_indices = @transform_2, window_bounds = array<i64: 1, 1, 1>}, {transform_indices = @transform_3, window_bounds = array<i64: 1, 4, 256>}]} {
    %c0 = arith.constant 0 : index
    %c0_0 = arith.constant 0 : index
    %c0_1 = arith.constant 0 : index
    %0 = vector.load %arg2[%c0, %c0_0, %c0_1] : memref<1x4x256xf32, #tpu.memory_space<vmem>>, vector<1x4x256xf32>
    %c0_2 = arith.constant 0 : index
    %c0_3 = arith.constant 0 : index
    %c0_4 = arith.constant 0 : index
    %1 = vector.load %arg3[%c0_2, %c0_3, %c0_4] : memref<1x4x1xf32, #tpu.memory_space<vmem>>, vector<1x4x1xf32>
    %2 = vector.broadcast %1 : vector<1x4x1xf32> to vector<1x4x256xf32>
    %3 = arith.mulf %0, %2 : vector<1x4x256xf32>
    %cst = arith.constant dense<0.000000e+00> : vector<1x256xf32>
    %4 = vector.multi_reduction <add>, %3, %cst [1] : vector<1x4x256xf32> to vector<1x256xf32>
    %5 = vector.shape_cast %4 : vector<1x256xf32> to vector<1x1x256xf32>
    %c0_5 = arith.constant 0 : index
    %c0_6 = arith.constant 0 : index
    %c0_7 = arith.constant 0 : index
    %6 = vector.load %arg4[%c0_5, %c0_6, %c0_7] : memref<1x1x1xf32, #tpu.memory_space<vmem>>, vector<1x1x1xf32>
    %7 = vector.broadcast %6 : vector<1x1x1xf32> to vector<1x1x256xf32>
    %8 = arith.addf %5, %7 : vector<1x1x256xf32>
    %cst_8 = arith.constant 0.000000e+00 : f32
    %9 = vector.broadcast %cst_8 : f32 to vector<1x1x256xf32>
    %10 = arith.subf %9, %8 : vector<1x1x256xf32>
    %11 = math.exp %10 : vector<1x1x256xf32>
    %cst_9 = arith.constant 1.000000e+00 : f32
    %12 = vector.broadcast %cst_9 : f32 to vector<1x1x256xf32>
    %13 = arith.addf %12, %11 : vector<1x1x256xf32>
    %14 = tpu.reciprocal %13 : vector<1x1x256xf32> -> vector<1x1x256xf32>
    %c0_10 = arith.constant 0 : index
    %c0_11 = arith.constant 0 : index
    %c0_12 = arith.constant 0 : index
    %15 = vector.load %arg2[%c0_10, %c0_11, %c0_12] : memref<1x4x256xf32, #tpu.memory_space<vmem>>, vector<1x4x256xf32>
    %16 = vector.broadcast %14 : vector<1x1x256xf32> to vector<1x4x256xf32>
    %17 = arith.mulf %15, %16 : vector<1x4x256xf32>
    %c0_13 = arith.constant 0 : index
    %c0_14 = arith.constant 0 : index
    %c0_15 = arith.constant 0 : index
    %18 = vector.load %arg5[%c0_13, %c0_14, %c0_15] : memref<1x4x256xf32, #tpu.memory_space<vmem>>, vector<1x4x256xf32>
    tpu.vector_store %arg5[%c0_13, %c0_14, %c0_15], %17 {strides = array<i32>} : memref<1x4x256xf32, #tpu.memory_space<vmem>>, vector<1x4x256xf32>,
    return
  }
  func.func @transform_0(%arg0: i32, %arg1: i32) -> (i32, i32, i32) {
    %c0_i32 = arith.constant 0 : i32
    %c0_i32_0 = arith.constant 0 : i32
    return %arg0, %c0_i32, %arg1 : i32, i32, i32
  }
  func.func @transform_1(%arg0: i32, %arg1: i32) -> (i32, i32, i32) {
    %c0_i32 = arith.constant 0 : i32
    %c0_i32_0 = arith.constant 0 : i32
    %c0_i32_1 = arith.constant 0 : i32
    %c0_i32_2 = arith.constant 0 : i32
    return %c0_i32, %c0_i32_0, %c0_i32_1 : i32, i32, i32
  }
  func.func @transform_2(%arg0: i32, %arg1: i32) -> (i32, i32, i32) {
    %c0_i32 = arith.constant 0 : i32
    %c0_i32_0 = arith.constant 0 : i32
    %c0_i32_1 = arith.constant 0 : i32
    %c0_i32_2 = arith.constant 0 : i32
    return %c0_i32, %c0_i32_0, %c0_i32_1 : i32, i32, i32
  }
  func.func @transform_3(%arg0: i32, %arg1: i32) -> (i32, i32, i32) {
    %c0_i32 = arith.constant 0 : i32
    %c0_i32_0 = arith.constant 0 : i32
    return %arg0, %c0_i32, %arg1 : i32, i32, i32
  }
}

</mosaic_0001>

<llo_original>
// kernel: tpu_custom_call.1
$region0: #{tpu_custom_call.1}
  #allocation0 [shape = 'u32[]', space=smem, size = 0x4, offset = 0x4, fixed_abs, tag = 'smem constant byte address 0x4 - core index']
  #allocation1 [shape = 'u32[144,128]{1,0:T(1,128)}', space=vmem, size = 0x12000, scoped, tag = 'internal scratch']
  #allocation2 [shape = 'f32[1,1,1]{2,1,0:T(1,128)S(1)}', space=vmem, size = 0x200, scoped, tag = 'scoped memory for tpu_custom_call.1']
  %s0 = inlined_call_operand.hbm [shape: f32[2,4,256], index: 0, kind: input, shape index: {}]
  %s1 = inlined_call_operand.vmem [shape: f32[1,4,1], index: 1, kind: input, shape index: {}]
  %s2 = inlined_call_operand.<no memory space> [shape: f32[1,1,1], index: 2, kind: input, shape index: {}]
  %s3 = inlined_call_operand.hbm [shape: f32[2,4,256], index: 3, kind: output, shape index: {}]
  %s4 = sld [smem:[#allocation0]]
  $region49: #{tpu_custom_call.1} parent=0
    _
  %s6 = ssub.s32 1, %s4
  %s7 = scalar_select 0, %s6, %s4
  %v8 = vstv %s2
  %9 = vst [vmem:[#allocation2] sm:$0x1] %v8
  $region1: #{tpu_custom_call.1} parent=0
    #allocation3 [shape = 'u8[8192]{0}', space=vmem, size = 0x2000, scoped, tag = 'input window, operand 0']
    #allocation4 [shape = 's32[2]{0}', space=sflag, size = 0x8, scoped, tag = 'scoped memory for tpu_custom_call.1']
    #allocation5 [shape = 's32[2]{0}', space=sflag, size = 0x8, scoped, tag = 'scoped memory for tpu_custom_call.1']
    #allocation6 [shape = 'u8[8192]{0}', space=vmem, size = 0x2000, scoped, tag = 'output window, operand 0']
    %10 = vsyncpa [#allocation4], 0
    %s11 = scalar_lea.sflag [#allocation4], 1
    %12 = vsyncpa %s11, 0
    %13 = vsyncpa [#allocation5], 0
    %s14 = scalar_lea.sflag [#allocation5], 1
    %15 = vsyncpa %s14, 0
    loop: start=0, step=1, limit=4
    $region2: #{tpu_custom_call.1} parent=1 // loop_pre_header
      _
    $region3: #{tpu_custom_call.1} parent=1 // loop_header
      %s17 = sphi 0, %s21
      %p18 = scmp.ge.s32.totalorder %s17, 4
      %s24 = sphi 0, %s36
      %s25 = sphi 0, %s32
      %s26 = sphi 0, %s24
      %s27 = sphi 0, %s25
      %s28 = sphi 0, %s26
      %s29 = sphi 0, %s27
      %s41 = sphi 0, %s43
      %s44 = sphi 0, %s41
      %s45 = sphi 0, %s44
      %s61 = sphi 0, %s45
      %s65 = sphi 0, %s65
      %s67 = sphi 0, %s65
      %s68 = sphi 0, %s67
      %s82 = sphi 0, %s68
      %s86 = sphi 0, %s86
      %s88 = sphi 0, %s86
      %s89 = sphi 0, %s88
      %s103 = sphi 0, %s89
      %s111 = sphi 0, %s113
      %s114 = sphi 0, %s111
      %s115 = sphi 0, %s114
      %s131 = sphi 0, %s115
    $region4: #{tpu_custom_call.1} parent=1 // loop_header_branch
      %20 = sbr.rel (%p18) target = $region8
    $region5: #{tpu_custom_call.1} parent=1 // loop_body
      %s22 = ssub.s32 %s17, 1
      %s23 = ssub.s32 %s17, 2
      %s30 = sadd.s32 1, %s25
      %p31 = scmp.ge.s32.totalorder %s30, 1
      %s32 = scalar_select %p31, 0, %s30
      %s33 = sadd.s32 1, %s24
      %s34 = scalar_select %p31, %s33, %s24
      %p35 = scmp.ge.s32.totalorder %s34, 2
      %s36 = scalar_select %p35, 0, %s34
      %s37 = ssub.s32 %s24, %s36
      %s38 = ssub.s32 %s25, %s32
      %s39 = sor.u32 %s37, %s38
      %p40 = scmp.eq.s32.totalorder %s39, 0
      %s42 = sadd.s32 %s41, 1
      %s43 = scalar_select %p40, %s41, %s42
      %p46 = pneg %p40
      %p47 = scmp.eq.s32.totalorder %s17, 1
      %p48 = por %p46, %p47
      %p49 = scmp.ne.s32.totalorder %s41, %s44
      %p50 = scmp.eq.s32.totalorder %s17, 0
      %p51 = por %p49, %p50
      %p52 = scmp.ne.s32.totalorder %s41, %s44
      %p53 = scmp.eq.s32.totalorder %s22, 1
      %p54 = por %p52, %p53
      %p55 = scmp.ne.s32.totalorder %s44, %s45
      %p56 = scmp.eq.s32.totalorder %s22, 0
      %p57 = por %p55, %p56
      %p58 = scmp.ne.s32.totalorder %s44, %s45
      %p59 = scmp.eq.s32.totalorder %s23, 1
      %p60 = por %p58, %p59
      %p62 = scmp.ne.s32.totalorder %s45, %s61
      %p63 = scmp.eq.s32.totalorder %s23, 0
      %p64 = por %p62, %p63
      %s66 = sadd.s32 %s65, 1
      %p69 = scmp.eq.s32.totalorder %s17, 1
      %p70 = scmp.ne.s32.totalorder %s65, %s67
      %p71 = scmp.eq.s32.totalorder %s17, 0
      %p72 = por %p70, %p71
      %p73 = scmp.ne.s32.totalorder %s65, %s67
      %p74 = scmp.eq.s32.totalorder %s22, 1
      %p75 = por %p73, %p74
      %p76 = scmp.ne.s32.totalorder %s67, %s68
      %p77 = scmp.eq.s32.totalorder %s22, 0
      %p78 = por %p76, %p77
      %p79 = scmp.ne.s32.totalorder %s67, %s68
      %p80 = scmp.eq.s32.totalorder %s23, 1
      %p81 = por %p79, %p80
      %p83 = scmp.ne.s32.totalorder %s68, %s82
      %p84 = scmp.eq.s32.totalorder %s23, 0
      %p85 = por %p83, %p84
      %s87 = sadd.s32 %s86, 1
      %p90 = scmp.eq.s32.totalorder %s17, 1
      %p91 = scmp.ne.s32.totalorder %s86, %s88
      %p92 = scmp.eq.s32.totalorder %s17, 0
      %p93 = por %p91, %p92
      %p94 = scmp.ne.s32.totalorder %s86, %s88
      %p95 = scmp.eq.s32.totalorder %s22, 1
      %p96 = por %p94, %p95
      %p97 = scmp.ne.s32.totalorder %s88, %s89
      %p98 = scmp.eq.s32.totalorder %s22, 0
      %p99 = por %p97, %p98
      %p100 = scmp.ne.s32.totalorder %s88, %s89
      %p101 = scmp.eq.s32.totalorder %s23, 1
      %p102 = por %p100, %p101
      %p104 = scmp.ne.s32.totalorder %s89, %s103
      %p105 = scmp.eq.s32.totalorder %s23, 0
      %p106 = por %p104, %p105
      %s107 = ssub.s32 %s24, %s36
      %s108 = ssub.s32 %s25, %s32
      %s109 = sor.u32 %s107, %s108
      %p110 = scmp.eq.s32.totalorder %s109, 0
      %s112 = sadd.s32 %s111, 1
      %s113 = scalar_select %p110, %s111, %s112
      %p116 = pneg %p110
      %p117 = scmp.eq.s32.totalorder %s17, 1
      %p118 = por %p116, %p117
      %p119 = scmp.ne.s32.totalorder %s111, %s114
      %p120 = scmp.eq.s32.totalorder %s17, 0
      %p121 = por %p119, %p120
      %p122 = scmp.ne.s32.totalorder %s111, %s114
      %p123 = scmp.eq.s32.totalorder %s22, 1
      %p124 = por %p122, %p123
      %p125 = scmp.ne.s32.totalorder %s114, %s115
      %p126 = scmp.eq.s32.totalorder %s22, 0
      %p127 = por %p125, %p126
      %p128 = scmp.ne.s32.totalorder %s114, %s115
      %p129 = scmp.eq.s32.totalorder %s23, 1
      %p130 = por %p128, %p129
      %p132 = scmp.ne.s32.totalorder %s115, %s131
      %p133 = scmp.eq.s32.totalorder %s23, 0
      %p134 = por %p132, %p133
      %p135 = scmp.le.s32.totalorder 1, %s17
      %p136 = scmp.lt.s32.totalorder %s17, 3
      %p137 = pnand %p135, %p136
      %p138 = pneg %p137
      // Predicated region
      $region9: #{tpu_custom_call.1} parent=5 // pred_check
        _
      $region10: #{tpu_custom_call.1} parent=5 // pred_check_branch
        %140 = sbr.rel (%p137) target = $region12
      $region11: #{tpu_custom_call.1} parent=5 // pred_region
        %s141 = ssub.s32 %s17, 1
        // Predicated region
        $region13: #{tpu_custom_call.1} parent=11 // pred_check
          %p142 = pneg %p78
        $region14: #{tpu_custom_call.1} parent=11 // pred_check_branch
          %144 = sbr.rel (%p142) target = $region16
        $region15: #{tpu_custom_call.1} parent=11 // pred_region
          _
        $region16: #{tpu_custom_call.1} parent=11 // pred_fallthru
          _
        // Predicated region
        $region17: #{tpu_custom_call.1} parent=11 // pred_check
          %p145 = pneg %p99
        $region18: #{tpu_custom_call.1} parent=11 // pred_check_branch
          %147 = sbr.rel (%p145) target = $region20
        $region19: #{tpu_custom_call.1} parent=11 // pred_region
          _
        $region20: #{tpu_custom_call.1} parent=11 // pred_fallthru
          _
      $region12: #{tpu_custom_call.1} parent=5 // pred_fallthru
        _
      %p148 = scmp.lt.s32.totalorder %s17, 2
      // Predicated region
      $region21: #{tpu_custom_call.1} parent=5 // pred_check
        %p149 = pneg %p148
      $region22: #{tpu_custom_call.1} parent=5 // pred_check_branch
        %151 = sbr.rel (%p149) target = $region24
      $region23: #{tpu_custom_call.1} parent=5 // pred_region
        // Predicated region
        $region25: #{tpu_custom_call.1} parent=23 // pred_check
          %p152 = pneg %p51
        $region26: #{tpu_custom_call.1} parent=23 // pred_check_branch
          %154 = sbr.rel (%p152) target = $region28
        $region27: #{tpu_custom_call.1} parent=23 // pred_region
          %s155 = sand.u32 %s41, 1
          %s156 = scalar_lea.sflag [#allocation4], %s155
          %s157 = sand.u32 %s41, 1
          %s158 = smul.addr %s157, 8
          %s159 = scalar_lea.vmem [#allocation3], %s158
          %s160 = smul.u32 2, %s25
          %s162 = ssub.s32 128, 128
          %163 = vsyncadd %s156, %s162
          %s164 = smul.addr %s24, 2
          %s165 = sadd.s32 %s160, %s164
          %s166 = smul.addr %s165, 64
          %s167 = scalar_lea.hbm %s0, %s166
          %s169 = sshll.u32 %s159, 4
          %s170 = int_to_ptr.vmem [resolvable:$true] %s169
          %172 = dma.hbm_to_vmem [thread:$0]  %s167, 128, %s170, %s156
        $region28: #{tpu_custom_call.1} parent=23 // pred_fallthru
          _
      $region24: #{tpu_custom_call.1} parent=5 // pred_fallthru
        _
      %p173 = scmp.le.s32.totalorder 1, %s17
      %p174 = scmp.lt.s32.totalorder %s17, 3
      %p175 = pnand %p173, %p174
      %p176 = pneg %p175
      // Predicated region
      $region29: #{tpu_custom_call.1} parent=5 // pred_check
        _
      $region30: #{tpu_custom_call.1} parent=5 // pred_check_branch
        %178 = sbr.rel (%p175) target = $region32
      $region31: #{tpu_custom_call.1} parent=5 // pred_region
        %s179 = ssub.s32 %s17, 1
        %s180 = sand.u32 %s44, 1
        %s181 = scalar_lea.sflag [#allocation4], %s180
        %s182 = sand.u32 %s44, 1
        %s183 = smul.addr %s182, 8
        %s184 = scalar_lea.vmem [#allocation3], %s183
        // Predicated region
        $region33: #{tpu_custom_call.1} parent=31 // pred_check
          %p185 = pneg %p57
        $region34: #{tpu_custom_call.1} parent=31 // pred_check_branch
          %187 = sbr.rel (%p185) target = $region36
        $region35: #{tpu_custom_call.1} parent=31 // pred_region
          %188 = dma.done %s181, 128
        $region36: #{tpu_custom_call.1} parent=31 // pred_fallthru
          _
        %s189 = sand.u32 %s44, 1
        %s190 = scalar_lea.sflag [#allocation4], %s189
        %s191 = sand.u32 %s44, 1
        %s192 = smul.addr %s191, 8
        %s193 = scalar_lea.vmem [#allocation3], %s192
        %p194 = pneg %p57
        %p195 = pneg %p54
        %p196 = pneg %p78
        %p197 = pneg %p75
        %p198 = pneg %p99
        %p199 = pneg %p96
        %p200 = pneg %p127
        %p201 = pneg %p124
        %s202 = sand.u32 %s114, 1
        %s203 = scalar_lea.sflag [#allocation5], %s202
        %s204 = sand.u32 %s114, 1
        %s205 = smul.addr %s204, 8
        %s206 = scalar_lea.vmem [#allocation6], %s205
        %s207 = smul.u32 2, %s27
        %s208 = smul.u32 2, %s27
        %v209 = vld [vmem:[%s184] sm:$0xff]
        %v210 = vld [vmem:[%s1] sm:$0xf]
        %212 = vset.pattern.permute.xlu0 0
        %213 = vperm.xlu0 %212, %v210
        %v214 = vpop.permute.xlu0 %213
        %v216 = vunpack.c.l.s4 839922192
        %v217 = vunpack.c.0.s8 %v216
        %v218 = vlaneseq
        %v219 = vshrl.u32 %v218, 7
        %v220 = vsub.s32 %v217, %v219
        %v221 = vrot.slane %v214, %v220
        %v223 = vmul.f32 %v209, %v221
        %v225 = vcombine.high %v223, %v223
        %vm227 = vcmask 1043456
        %v228 = vsel %vm227, %v223, 0.0
        %v229 = vrot.slane %v228, 4
        %v230 = vadd.f32 %v228, %v229
        %v231 = vrot.slane %v230, 2
        %v232 = vadd.f32 %v230, %v231
        %v233 = vrot.slane %v232, 1
        %v234 = vadd.f32 %v232, %v233
        %v235 = vsel %vm227, %v225, 0.0
        %v236 = vrot.slane %v235, 4
        %v237 = vadd.f32 %v235, %v236
        %v238 = vrot.slane %v237, 2
        %v239 = vadd.f32 %v237, %v238
        %v240 = vrot.slane %v239, 1
        %v241 = vadd.f32 %v239, %v240
        %v242 = vld [vmem:[#allocation2] sm:$0x1]
        %244 = vset.pattern.permute.xlu0 0
        %245 = vperm.xlu0 %244, %v242
        %v246 = vpop.permute.xlu0 %245
        %v248 = vlaneseq
        %v249 = vshrl.u32 %v248, 7
        %v250 = vsub.s32 0, %v249
        %v251 = vrot.slane %v246, %v250
        %v252 = vadd.f32 %v234, %v251
        %v253 = vadd.f32 %v241, %v251
        %v254 = vsub.f32 0.0, %v252
        %v255 = vsub.f32 0.0, %v253
        %v256 = vmul.f32 %v254, 1.442695
        %v257 = vpow.pop %v256
        %v258 = vmul.f32 %v255, 1.442695
        %v259 = vpow.pop %v258
        %v260 = vadd.f32 %v257, 1.0
        %v261 = vadd.f32 %v259, 1.0
        %v262 = vrcp.pop %v260
        %v263 = vrcp.pop %v261
        %v266 = vcombine.low %v262, %v263
        %v268 = vmul.f32 %v209, %v266
        %269 = vst [vmem:[%s206] sm:$0xff] %v268
        %s270 = sand.u32 %s114, 1
        %s271 = scalar_lea.sflag [#allocation5], %s270
        %s272 = sand.u32 %s114, 1
        %s273 = smul.addr %s272, 8
        %s274 = scalar_lea.vmem [#allocation6], %s273
        // Predicated region
        $region37: #{tpu_custom_call.1} parent=31 // pred_check
          %p275 = pneg %p124
        $region38: #{tpu_custom_call.1} parent=31 // pred_check_branch
          %277 = sbr.rel (%p275) target = $region40
        $region39: #{tpu_custom_call.1} parent=31 // pred_region
          %s278 = smul.u32 2, %s27
          %s280 = ssub.s32 128, 128
          %281 = vsyncadd %s271, %s280
          %s282 = smul.addr %s26, 2
          %s283 = sadd.s32 %s278, %s282
          %s284 = smul.addr %s283, 64
          %s285 = scalar_lea.hbm %s3, %s284
          %s287 = sshll.u32 %s274, 4
          %s288 = int_to_ptr.vmem [resolvable:$true] %s287
          %290 = dma.vmem_to_hbm [thread:$0]  %s288, 128, %s285, %s271
        $region40: #{tpu_custom_call.1} parent=31 // pred_fallthru
          _
      $region32: #{tpu_custom_call.1} parent=5 // pred_fallthru
        _
      %p291 = scmp.le.s32.totalorder 2, %s17
      // Predicated region
      $region41: #{tpu_custom_call.1} parent=5 // pred_check
        %p292 = pneg %p291
      $region42: #{tpu_custom_call.1} parent=5 // pred_check_branch
        %294 = sbr.rel (%p292) target = $region44
      $region43: #{tpu_custom_call.1} parent=5 // pred_region
        %s295 = ssub.s32 %s17, 2
        // Predicated region
        $region45: #{tpu_custom_call.1} parent=43 // pred_check
          %p296 = pneg %p130
        $region46: #{tpu_custom_call.1} parent=43 // pred_check_branch
          %298 = sbr.rel (%p296) target = $region48
        $region47: #{tpu_custom_call.1} parent=43 // pred_region
          %s299 = sand.u32 %s115, 1
          %s300 = scalar_lea.sflag [#allocation5], %s299
          %s301 = sand.u32 %s115, 1
          %s302 = smul.addr %s301, 8
          %s303 = scalar_lea.vmem [#allocation6], %s302
          %304 = dma.done %s300, 128
        $region48: #{tpu_custom_call.1} parent=43 // pred_fallthru
          _
      $region44: #{tpu_custom_call.1} parent=5 // pred_fallthru
        _
    $region6: #{tpu_custom_call.1} parent=1 // loop_footer
      %s21 = sadd.s32 1, %s17
    $region7: #{tpu_custom_call.1} parent=1 // loop_footer_branch
      %16 = sbr.rel target = $region3
    $region8: #{tpu_custom_call.1} parent=1 // loop_exit
      _
    %305 = vsyncpa [#allocation4], 1
    %s306 = scalar_lea.sflag [#allocation4], 1
    %307 = vsyncpa %s306, 1
    %308 = vsyncpa [#allocation5], 1
    %s309 = scalar_lea.sflag [#allocation5], 1
    %310 = vsyncpa %s309, 1

</llo_original>
